<compile_context>
chip_gen: v6e
topology: v6e:2x2x1
jax: 0.10.0
libtpu: 0.0.40
codegen_flags: <defaults>
</compile_context>

<pallas_src>
from collections import namedtuple

import jax
import jax.numpy as jnp
from jax import lax
from jax.experimental import pallas as pl
from jax.experimental.pallas import tpu as pltpu

T = namedtuple("T", ["rots", "trans"])


def _backbone_update_kernel(s_ref, w_ref, b_ref, out_ref):
    # s_ref  : (tm, C)    VMEM  -- single-representation rows for this tile
    # w_ref  : (C, 128)   VMEM  -- Linear weight, zero-padded past column 6
    # b_ref  : (1, 128)   VMEM  -- Linear bias, zero-padded past column 6
    # out_ref: (12, tm)   VMEM  -- rows 0..8: row-major 3x3 rotation,
    #                              rows 9..11: translation (x, y, z)
    s = s_ref[...]
    w = w_ref[...]

    # Linear(c_s -> 6) on the MXU; f32 accumulate.
    params = jnp.dot(s, w, preferred_element_type=jnp.float32) + b_ref[...]

    # One small aligned (tm, 128) -> (128, tm) transpose on the XLU; after
    # this every elementwise op is a lane-dense (1, tm) row.
    pt = params.T                      # (128, tm); only rows 0..5 meaningful

    qb = pt[0:1, :]
    qc = pt[1:2, :]
    qd = pt[2:3, :]

    # Unnormalized quaternion is (1, qb, qc, qd); rsqrt runs on the EUP.
    inv = lax.rsqrt(qb * qb + qc * qc + qd * qd + 1.0)
    a = inv
    b = qb * inv
    c = qc * inv
    d = qd * inv

    bb, cc, dd = b * b, c * c, d * d
    bc, ad, bd = b * c, a * d, b * d
    ac, cd, ab = a * c, c * d, a * b

    # Diagonal terms use a^2 + b^2 + c^2 + d^2 == 1.
    out_ref[0:1, :] = 1.0 - 2.0 * (cc + dd)      # r00
    out_ref[1:2, :] = 2.0 * (bc - ad)            # r01
    out_ref[2:3, :] = 2.0 * (bd + ac)            # r02
    out_ref[3:4, :] = 2.0 * (bc + ad)            # r10
    out_ref[4:5, :] = 1.0 - 2.0 * (bb + dd)      # r11
    out_ref[5:6, :] = 2.0 * (cd - ab)            # r12
    out_ref[6:7, :] = 2.0 * (bd - ac)            # r20
    out_ref[7:8, :] = 2.0 * (cd + ab)            # r21
    out_ref[8:9, :] = 1.0 - 2.0 * (bb + cc)      # r22
    out_ref[9:12, :] = pt[3:6, :]                # translation


def backbone_update(s, weight, bias, *, tm=1024):
    """s: [B, N_res, C_s]; weight: [C_s, 6]; bias: [6].

    Returns T(rots=[B, N_res, 3, 3], trans=[B, N_res, 3]).
    """
    B, N, C = s.shape
    M = B * N
    in_dtype = s.dtype

    # --- choose the row tile (multiple of 128; >=2 grid steps if possible) ---
    lane_blocks = pl.cdiv(M, 128)
    grid_m = pl.cdiv(lane_blocks, max(1, tm // 128))
    grid_m = max(grid_m, min(2, lane_blocks))       # give both v7x TCs work
    tm_blocks = pl.cdiv(lane_blocks, grid_m)
    grid_m = pl.cdiv(lane_blocks, tm_blocks)
    tm_eff = tm_blocks * 128
    M_pad = grid_m * tm_eff

    # --- prepare operands ----------------------------------------------------
    s_flat = s.reshape(M, C)
    if M_pad != M:
        s_flat = jnp.pad(s_flat, ((0, M_pad - M), (0, 0)))
    # Zero-pad the 6 linear output channels up to a full 128-lane width.
    w_pad = jnp.pad(weight.astype(in_dtype), ((0, 0), (0, 128 - 6)))
    b_pad = jnp.pad(bias.astype(jnp.float32), (0, 128 - 6)).reshape(1, 128)

    itemsize = jnp.dtype(in_dtype).itemsize
    cost = pl.CostEstimate(
        flops=2 * M_pad * C * 128 + 40 * M_pad,
        transcendentals=M_pad,
        bytes_accessed=M_pad * C * itemsize + 12 * M_pad * 4
        + C * 128 * itemsize + 512,
    )

    out12 = pl.pallas_call(
        _backbone_update_kernel,
        out_shape=jax.ShapeDtypeStruct((12, M_pad), jnp.float32),
        grid_spec=pltpu.PrefetchScalarGridSpec(
            num_scalar_prefetch=0,
            grid=(grid_m,),
            in_specs=[
                pl.BlockSpec((tm_eff, C), lambda i: (i, 0)),
                pl.BlockSpec((C, 128), lambda i: (0, 0)),
                pl.BlockSpec((1, 128), lambda i: (0, 0)),
            ],
            out_specs=pl.BlockSpec((12, tm_eff), lambda i: (0, i)),
        ),
        compiler_params=pltpu.CompilerParams(
            dimension_semantics=("parallel",)),
        cost_estimate=cost,
    )(s_flat, w_pad, b_pad)

    out = out12[:, :M].T                          # (M, 12), tiny wrapper transpose
    rots = out[:, :9].reshape(B, N, 3, 3)
    trans = out[:, 9:12].reshape(B, N, 3)
    return T(rots, trans)


def _reference(s, weight, bias):
    """Pure-JAX reference mirroring the PyTorch forward."""
    params = jnp.einsum("bnc,cf->bnf", s, weight) + bias
    quats, trans = params[..., :3], params[..., 3:]
    norm_denom = jnp.sqrt(jnp.sum(quats ** 2, axis=-1) + 1.0)
    ones = jnp.ones(quats.shape[:-1] + (1,), dtype=s.dtype)
    quats = jnp.concatenate((ones, quats), axis=-1)
    quats = quats / norm_denom[..., None]
    a, b, c, d = quats[..., 0], quats[..., 1], quats[..., 2], quats[..., 3]
    rots = jnp.stack([
        a * a + b * b - c * c - d * d, 2 * (b * c - a * d), 2 * (b * d + a * c),
        2 * (b * c + a * d), a * a - b * b + c * c - d * d, 2 * (c * d - a * b),
        2 * (b * d - a * c), 2 * (c * d + a * b), a * a - b * b - c * c + d * d,
    ], axis=-1).reshape(s.shape[:-1] + (3, 3))
    return T(rots, trans)


if __name__ == "__main__":
    key = jax.random.PRNGKey(0)
    k_s, k_w, k_b = jax.random.split(key, 3)

    B, N_res, C_s = 2, 8, 32
    s = jax.random.normal(k_s, (B, N_res, C_s), dtype=jnp.float32)
    # Deterministic synthetic parameters for Linear(c_s, 6).
    weight = jax.random.normal(k_w, (C_s, 6), dtype=jnp.float32) * 0.1
    bias = jax.random.normal(k_b, (6,), dtype=jnp.float32) * 0.1

    out = backbone_update(s, weight, bias)
    jax.block_until_ready(out.rots)
    jax.block_until_ready(out.trans)

    ref = _reference(s, weight, bias)
    assert jnp.allclose(out.rots, ref.rots, atol=1e-5, rtol=1e-5)
    assert jnp.allclose(out.trans, ref.trans, atol=1e-5, rtol=1e-5)

    print("KERNEL_OK")
</pallas_src>

<mosaic_0001>
module attributes {stable_mosaic.version = 11 : i64} {
  func.func @_backbone_update_kernel(%arg0: i32, %arg1: memref<128x32xf32, #tpu.memory_space<vmem>>, %arg2: memref<32x128xf32, #tpu.memory_space<vmem>>, %arg3: memref<1x128xf32, #tpu.memory_space<vmem>>, %arg4: memref<12x128xf32, #tpu.memory_space<vmem>>) attributes {dimension_semantics = [#tpu.dimension_semantics<parallel>], iteration_bounds = array<i64: 1>, scalar_prefetch = 0 : i64, scratch_operands = 0 : i64, tpu.core_type = #tpu.core_type<tc>, window_params = [{transform_indices = @transform_0, window_bounds = array<i64: 128, 32>}, {pipeline_mode = #tpu.pipeline_mode<synchronous>, transform_indices = @transform_1, window_bounds = array<i64: 32, 128>}, {pipeline_mode = #tpu.pipeline_mode<synchronous>, transform_indices = @transform_2, window_bounds = array<i64: 1, 128>}, {transform_indices = @transform_3, window_bounds = array<i64: 12, 128>}]} {
    %c0 = arith.constant 0 : index
    %c0_0 = arith.constant 0 : index
    %0 = vector.load %arg1[%c0, %c0_0] : memref<128x32xf32, #tpu.memory_space<vmem>>, vector<128x32xf32>
    %c0_1 = arith.constant 0 : index
    %c0_2 = arith.constant 0 : index
    %1 = vector.load %arg2[%c0_1, %c0_2] : memref<32x128xf32, #tpu.memory_space<vmem>>, vector<32x128xf32>
    %cst = arith.constant dense<0.000000e+00> : vector<128x128xf32>
    %2 = tpu.matmul %0, %1, %cst {dimension_numbers = #tpu.dot_dimension_numbers<[1], [0], [0], [1], [0, 0, 1, 1], [], []>} : vector<128x32xf32>, vector<32x128xf32>, vector<128x128xf32> -> vector<128x128xf32>
    %c0_3 = arith.constant 0 : index
    %c0_4 = arith.constant 0 : index
    %3 = vector.load %arg3[%c0_3, %c0_4] : memref<1x128xf32, #tpu.memory_space<vmem>>, vector<1x128xf32>
    %4 = vector.broadcast %3 : vector<1x128xf32> to vector<128x128xf32>
    %5 = arith.addf %2, %4 : vector<128x128xf32>
    %6 = tpu.transpose %5, [1, 0] : vector<128x128xf32> -> vector<128x128xf32>
    %7 = vector.extract_strided_slice %6 {offsets = [0, 0], sizes = [1, 128], strides = [1, 1]} : vector<128x128xf32> to vector<1x128xf32>
    %8 = vector.extract_strided_slice %6 {offsets = [1, 0], sizes = [1, 128], strides = [1, 1]} : vector<128x128xf32> to vector<1x128xf32>
    %9 = vector.extract_strided_slice %6 {offsets = [2, 0], sizes = [1, 128], strides = [1, 1]} : vector<128x128xf32> to vector<1x128xf32>
    %10 = arith.mulf %7, %7 : vector<1x128xf32>
    %11 = arith.mulf %8, %8 : vector<1x128xf32>
    %12 = arith.addf %10, %11 : vector<1x128xf32>
    %13 = arith.mulf %9, %9 : vector<1x128xf32>
    %14 = arith.addf %12, %13 : vector<1x128xf32>
    %cst_5 = arith.constant 1.000000e+00 : f32
    %15 = vector.broadcast %cst_5 : f32 to vector<1x128xf32>
    %16 = arith.addf %14, %15 : vector<1x128xf32>
    %17 = math.rsqrt %16 : vector<1x128xf32>
    %18 = arith.mulf %7, %17 : vector<1x128xf32>
    %19 = arith.mulf %8, %17 : vector<1x128xf32>
    %20 = arith.mulf %9, %17 : vector<1x128xf32>
    %21 = arith.mulf %18, %18 : vector<1x128xf32>
    %22 = arith.mulf %19, %19 : vector<1x128xf32>
    %23 = arith.mulf %20, %20 : vector<1x128xf32>
    %24 = arith.mulf %18, %19 : vector<1x128xf32>
    %25 = arith.mulf %17, %20 : vector<1x128xf32>
    %26 = arith.mulf %18, %20 : vector<1x128xf32>
    %27 = arith.mulf %17, %19 : vector<1x128xf32>
    %28 = arith.mulf %19, %20 : vector<1x128xf32>
    %29 = arith.mulf %17, %18 : vector<1x128xf32>
    %30 = arith.addf %22, %23 : vector<1x128xf32>
    %cst_6 = arith.constant 2.000000e+00 : f32
    %31 = vector.broadcast %cst_6 : f32 to vector<1x128xf32>
    %32 = arith.mulf %31, %30 : vector<1x128xf32>
    %cst_7 = arith.constant 1.000000e+00 : f32
    %33 = vector.broadcast %cst_7 : f32 to vector<1x128xf32>
    %34 = arith.subf %33, %32 : vector<1x128xf32>
    %c0_8 = arith.constant 0 : index
    %c0_9 = arith.constant 0 : index
    %35 = vector.load %arg4[%c0_8, %c0_9] : memref<12x128xf32, #tpu.memory_space<vmem>>, vector<1x128xf32>
    tpu.vector_store %arg4[%c0_8, %c0_9], %34 {strides = array<i32>} : memref<12x128xf32, #tpu.memory_space<vmem>>, vector<1x128xf32>,
    %36 = arith.subf %24, %25 : vector<1x128xf32>
    %cst_10 = arith.constant 2.000000e+00 : f32
    %37 = vector.broadcast %cst_10 : f32 to vector<1x128xf32>
    %38 = arith.mulf %37, %36 : vector<1x128xf32>
    %c1 = arith.constant 1 : index
    %c0_11 = arith.constant 0 : index
    %39 = vector.load %arg4[%c1, %c0_11] : memref<12x128xf32, #tpu.memory_space<vmem>>, vector<1x128xf32>
    tpu.vector_store %arg4[%c1, %c0_11], %38 {strides = array<i32>} : memref<12x128xf32, #tpu.memory_space<vmem>>, vector<1x128xf32>,
    %40 = arith.addf %26, %27 : vector<1x128xf32>
    %cst_12 = arith.constant 2.000000e+00 : f32
    %41 = vector.broadcast %cst_12 : f32 to vector<1x128xf32>
    %42 = arith.mulf %41, %40 : vector<1x128xf32>
    %c2 = arith.constant 2 : index
    %c0_13 = arith.constant 0 : index
    %43 = vector.load %arg4[%c2, %c0_13] : memref<12x128xf32, #tpu.memory_space<vmem>>, vector<1x128xf32>
    tpu.vector_store %arg4[%c2, %c0_13], %42 {strides = array<i32>} : memref<12x128xf32, #tpu.memory_space<vmem>>, vector<1x128xf32>,
    %44 = arith.addf %24, %25 : vector<1x128xf32>
    %cst_14 = arith.constant 2.000000e+00 : f32
    %45 = vector.broadcast %cst_14 : f32 to vector<1x128xf32>
    %46 = arith.mulf %45, %44 : vector<1x128xf32>
    %c3 = arith.constant 3 : index
    %c0_15 = arith.constant 0 : index
    %47 = vector.load %arg4[%c3, %c0_15] : memref<12x128xf32, #tpu.memory_space<vmem>>, vector<1x128xf32>
    tpu.vector_store %arg4[%c3, %c0_15], %46 {strides = array<i32>} : memref<12x128xf32, #tpu.memory_space<vmem>>, vector<1x128xf32>,
    %48 = arith.addf %21, %23 : vector<1x128xf32>
    %cst_16 = arith.constant 2.000000e+00 : f32
    %49 = vector.broadcast %cst_16 : f32 to vector<1x128xf32>
    %50 = arith.mulf %49, %48 : vector<1x128xf32>
    %cst_17 = arith.constant 1.000000e+00 : f32
    %51 = vector.broadcast %cst_17 : f32 to vector<1x128xf32>
    %52 = arith.subf %51, %50 : vector<1x128xf32>
    %c4 = arith.constant 4 : index
    %c0_18 = arith.constant 0 : index
    %53 = vector.load %arg4[%c4, %c0_18] : memref<12x128xf32, #tpu.memory_space<vmem>>, vector<1x128xf32>
    tpu.vector_store %arg4[%c4, %c0_18], %52 {strides = array<i32>} : memref<12x128xf32, #tpu.memory_space<vmem>>, vector<1x128xf32>,
    %54 = arith.subf %28, %29 : vector<1x128xf32>
    %cst_19 = arith.constant 2.000000e+00 : f32
    %55 = vector.broadcast %cst_19 : f32 to vector<1x128xf32>
    %56 = arith.mulf %55, %54 : vector<1x128xf32>
    %c5 = arith.constant 5 : index
    %c0_20 = arith.constant 0 : index
    %57 = vector.load %arg4[%c5, %c0_20] : memref<12x128xf32, #tpu.memory_space<vmem>>, vector<1x128xf32>
    tpu.vector_store %arg4[%c5, %c0_20], %56 {strides = array<i32>} : memref<12x128xf32, #tpu.memory_space<vmem>>, vector<1x128xf32>,
    %58 = arith.subf %26, %27 : vector<1x128xf32>
    %cst_21 = arith.constant 2.000000e+00 : f32
    %59 = vector.broadcast %cst_21 : f32 to vector<1x128xf32>
    %60 = arith.mulf %59, %58 : vector<1x128xf32>
    %c6 = arith.constant 6 : index
    %c0_22 = arith.constant 0 : index
    %61 = vector.load %arg4[%c6, %c0_22] : memref<12x128xf32, #tpu.memory_space<vmem>>, vector<1x128xf32>
    tpu.vector_store %arg4[%c6, %c0_22], %60 {strides = array<i32>} : memref<12x128xf32, #tpu.memory_space<vmem>>, vector<1x128xf32>,
    %62 = arith.addf %28, %29 : vector<1x128xf32>
    %cst_23 = arith.constant 2.000000e+00 : f32
    %63 = vector.broadcast %cst_23 : f32 to vector<1x128xf32>
    %64 = arith.mulf %63, %62 : vector<1x128xf32>
    %c7 = arith.constant 7 : index
    %c0_24 = arith.constant 0 : index
    %65 = vector.load %arg4[%c7, %c0_24] : memref<12x128xf32, #tpu.memory_space<vmem>>, vector<1x128xf32>
    tpu.vector_store %arg4[%c7, %c0_24], %64 {strides = array<i32>} : memref<12x128xf32, #tpu.memory_space<vmem>>, vector<1x128xf32>,
    %66 = arith.addf %21, %22 : vector<1x128xf32>
    %cst_25 = arith.constant 2.000000e+00 : f32
    %67 = vector.broadcast %cst_25 : f32 to vector<1x128xf32>
    %68 = arith.mulf %67, %66 : vector<1x128xf32>
    %cst_26 = arith.constant 1.000000e+00 : f32
    %69 = vector.broadcast %cst_26 : f32 to vector<1x128xf32>
    %70 = arith.subf %69, %68 : vector<1x128xf32>
    %c8 = arith.constant 8 : index
    %c0_27 = arith.constant 0 : index
    %71 = vector.load %arg4[%c8, %c0_27] : memref<12x128xf32, #tpu.memory_space<vmem>>, vector<1x128xf32>
    tpu.vector_store %arg4[%c8, %c0_27], %70 {strides = array<i32>} : memref<12x128xf32, #tpu.memory_space<vmem>>, vector<1x128xf32>,
    %72 = vector.extract_strided_slice %6 {offsets = [3, 0], sizes = [3, 128], strides = [1, 1]} : vector<128x128xf32> to vector<3x128xf32>
    %c9 = arith.constant 9 : index
    %c0_28 = arith.constant 0 : index
    %73 = vector.load %arg4[%c9, %c0_28] : memref<12x128xf32, #tpu.memory_space<vmem>>, vector<3x128xf32>
    tpu.vector_store %arg4[%c9, %c0_28], %72 {strides = array<i32>} : memref<12x128xf32, #tpu.memory_space<vmem>>, vector<3x128xf32>,
    return
  }
  func.func @transform_0(%arg0: i32) -> (i32, i32) {
    %c0_i32 = arith.constant 0 : i32
    %c0_i32_0 = arith.constant 0 : i32
    return %arg0, %c0_i32 : i32, i32
  }
  func.func @transform_1(%arg0: i32) -> (i32, i32) {
    %c0_i32 = arith.constant 0 : i32
    %c0_i32_0 = arith.constant 0 : i32
    %c0_i32_1 = arith.constant 0 : i32
    return %c0_i32, %c0_i32_0 : i32, i32
  }
  func.func @transform_2(%arg0: i32) -> (i32, i32) {
    %c0_i32 = arith.constant 0 : i32
    %c0_i32_0 = arith.constant 0 : i32
    %c0_i32_1 = arith.constant 0 : i32
    return %c0_i32, %c0_i32_0 : i32, i32
  }
  func.func @transform_3(%arg0: i32) -> (i32, i32) {
    %c0_i32 = arith.constant 0 : i32
    %c0_i32_0 = arith.constant 0 : i32
    return %c0_i32, %arg0 : i32, i32
  }
}

</mosaic_0001>

<llo_original>
// kernel: tpu_custom_call.1
$region0: #{tpu_custom_call.1}
  #allocation0 [shape = 'u32[]', space=smem, size = 0x4, offset = 0x4, fixed_abs, tag = 'smem constant byte address 0x4 - core index']
  #allocation1 [shape = 'u32[144,128]{1,0:T(1,128)}', space=vmem, size = 0x12000, scoped, tag = 'internal scratch']
  %s0 = inlined_call_operand.vmem [shape: f32[128,32], index: 0, kind: input, shape index: {}]
  %s1 = inlined_call_operand.vmem [shape: f32[32,128], index: 1, kind: input, shape index: {}]
  %s2 = inlined_call_operand.vmem [shape: f32[1,128], index: 2, kind: input, shape index: {}]
  %s3 = inlined_call_operand.hbm [shape: f32[12,128], index: 3, kind: output, shape index: {}]
  %s4 = sld [smem:[#allocation0]]
  $region22: #{tpu_custom_call.1} parent=0
    _
  %s6 = ssub.s32 1, %s4
  %s7 = scalar_select 0, %s6, %s4
  $region1: #{tpu_custom_call.1} parent=0
    #allocation2 [shape = 'u8[8192]{0}', space=vmem, size = 0x2000, scoped, tag = 'output window, operand 0, single buffered']
    #allocation3 [shape = 's32[1]{0}', space=sflag, size = 0x4, scoped, tag = 'scoped memory for tpu_custom_call.1']
    %8 = vsyncpa [#allocation3], 0
    // Predicated region
    $region2: #{tpu_custom_call.1} parent=1 // pred_check
      _
    $region3: #{tpu_custom_call.1} parent=1 // pred_check_branch
      %10 = sbr.rel (0) target = $region5
    $region4: #{tpu_custom_call.1} parent=1 // pred_region
      _
    $region5: #{tpu_custom_call.1} parent=1 // pred_fallthru
      _
    // Predicated region
    $region6: #{tpu_custom_call.1} parent=1 // pred_check
      _
    $region7: #{tpu_custom_call.1} parent=1 // pred_check_branch
      %12 = sbr.rel (0) target = $region9
    $region8: #{tpu_custom_call.1} parent=1 // pred_region
      _
    $region9: #{tpu_custom_call.1} parent=1 // pred_fallthru
      _
    // Predicated region
    $region10: #{tpu_custom_call.1} parent=1 // pred_check
      _
    $region11: #{tpu_custom_call.1} parent=1 // pred_check_branch
      %14 = sbr.rel (0) target = $region13
    $region12: #{tpu_custom_call.1} parent=1 // pred_region
      _
    $region13: #{tpu_custom_call.1} parent=1 // pred_fallthru
      _
    %v15 = vld [vmem:[%s0] sm:$0xff]
    %v16 = vld [vmem:[%s0 + $0x8] sm:$0xff]
    %v17 = vld [vmem:[%s0 + $0x10] sm:$0xff]
    %v18 = vld [vmem:[%s0 + $0x18] sm:$0xff]
    %v19 = vld [vmem:[%s0 + $0x20] sm:$0xff]
    %v20 = vld [vmem:[%s0 + $0x28] sm:$0xff]
    %v21 = vld [vmem:[%s0 + $0x30] sm:$0xff]
    %v22 = vld [vmem:[%s0 + $0x38] sm:$0xff]
    %v23 = vld [vmem:[%s0 + $0x40] sm:$0xff]
    %v24 = vld [vmem:[%s0 + $0x48] sm:$0xff]
    %v25 = vld [vmem:[%s0 + $0x50] sm:$0xff]
    %v26 = vld [vmem:[%s0 + $0x58] sm:$0xff]
    %v27 = vld [vmem:[%s0 + $0x60] sm:$0xff]
    %v28 = vld [vmem:[%s0 + $0x68] sm:$0xff]
    %v29 = vld [vmem:[%s0 + $0x70] sm:$0xff]
    %v30 = vld [vmem:[%s0 + $0x78] sm:$0xff]
    %v31 = vld [vmem:[%s1] sm:$0xff]
    %v32 = vld [vmem:[%s1 + $0x8] sm:$0xff]
    %v33 = vld [vmem:[%s1 + $0x10] sm:$0xff]
    %v34 = vld [vmem:[%s1 + $0x18] sm:$0xff]
    %v35 = vld [vmem:[%s2] sm:$0x1]
    %v37 = vlaneseq
    %v38 = vshrl.u32 %v37, 7
    %v39 = vsub.s32 0, %v38
    %v40 = vrot.slane %v35, %v39
    %vm42 = vcmask 261120
    %v44 = vsel %vm42, %v15, 0
    %v47 = vsel %vm42, %v16, 0
    %v50 = vsel %vm42, %v17, 0
    %v53 = vsel %vm42, %v18, 0
    %v56 = vsel %vm42, %v19, 0
    %v59 = vsel %vm42, %v20, 0
    %v62 = vsel %vm42, %v21, 0
    %v65 = vsel %vm42, %v22, 0
    %v68 = vsel %vm42, %v23, 0
    %v71 = vsel %vm42, %v24, 0
    %v74 = vsel %vm42, %v25, 0
    %v77 = vsel %vm42, %v26, 0
    %v80 = vsel %vm42, %v27, 0
    %v83 = vsel %vm42, %v28, 0
    %v86 = vsel %vm42, %v29, 0
    %v89 = vsel %vm42, %v30, 0
    %91 = vmatprep.subr.mxu0 0.0
    %92 = vmatpush1.msra.mxu0 0.0
    %93 = vmatprep.subr.mxu0 0.0
    %94 = vmatpush1.msra.mxu0 0.0
    %95 = vmatprep.subr.mxu0 0.0
    %96 = vmatpush1.msra.mxu0 0.0
    %97 = vmatprep.subr.mxu0 0.0
    %98 = vmatpush1.msra.mxu0 0.0
    %99 = vmatprep.subr.mxu0 0.0
    %100 = vmatpush1.msra.mxu0 0.0
    %101 = vmatprep.subr.mxu0 0.0
    %102 = vmatpush1.msra.mxu0 0.0
    %103 = vmatprep.subr.mxu0 0.0
    %104 = vmatpush1.msra.mxu0 0.0
    %105 = vmatprep.subr.mxu0 0.0
    %106 = vmatpush1.msra.mxu0 0.0
    %107 = vmatprep.subr.mxu0 0.0
    %108 = vmatpush1.msra.mxu0 0.0
    %109 = vmatprep.subr.mxu0 0.0
    %110 = vmatpush1.msra.mxu0 0.0
    %111 = vmatprep.subr.mxu0 0.0
    %112 = vmatpush1.msra.mxu0 0.0
    %113 = vmatprep.subr.mxu0 0.0
    %114 = vmatpush1.msra.mxu0 0.0
    %115 = vmatprep.subr.mxu0 0.0
    %116 = vmatpush1.msra.mxu0 %v34
    %117 = vmatprep.subr.mxu0 0.0
    %118 = vmatpush1.msra.mxu0 %v33
    %119 = vmatprep.subr.mxu0 0.0
    %120 = vmatpush1.msra.mxu0 %v32
    %121 = vmatprep.subr.mxu0 0.0
    %122 = vmatpush1.msra.mxu0 %v31
    %123 = vmatprep.subr.mxu0 0.0
    %124 = vmatpush2.msra.mxu0 0.0
    %125 = vmatprep.subr.mxu0 0.0
    %126 = vmatpush2.msra.mxu0 0.0
    %127 = vmatprep.subr.mxu0 0.0
    %128 = vmatpush2.msra.mxu0 0.0
    %129 = vmatprep.subr.mxu0 0.0
    %130 = vmatpush2.msra.mxu0 0.0
    %131 = vmatprep.subr.mxu0 0.0
    %132 = vmatpush2.msra.mxu0 0.0
    %133 = vmatprep.subr.mxu0 0.0
    %134 = vmatpush2.msra.mxu0 0.0
    %135 = vmatprep.subr.mxu0 0.0
    %136 = vmatpush2.msra.mxu0 0.0
    %137 = vmatprep.subr.mxu0 0.0
    %138 = vmatpush2.msra.mxu0 0.0
    %139 = vmatprep.subr.mxu0 0.0
    %140 = vmatpush2.msra.mxu0 0.0
    %141 = vmatprep.subr.mxu0 0.0
    %142 = vmatpush2.msra.mxu0 0.0
    %143 = vmatprep.subr.mxu0 0.0
    %144 = vmatpush2.msra.mxu0 0.0
    %145 = vmatprep.subr.mxu0 0.0
    %146 = vmatpush2.msra.mxu0 0.0
    %147 = vmatprep.subr.mxu0 0.0
    %148 = vmatpush2.msra.mxu0 0.0
    %149 = vmatprep.subr.mxu0 0.0
    %150 = vmatpush2.msra.mxu0 0.0
    %151 = vmatprep.subr.mxu0 0.0
    %152 = vmatpush2.msra.mxu0 0.0
    %153 = vmatprep.subr.mxu0 0.0
    %154 = vmatpush2.msra.mxu0 0.0
    %155 = vmatprep.mubr.f32.mxu0 0.0
    %156 = vmatmul.mubr.f32.gmra.mxu0 %v44
    %v157 = vpop.f32.mrf.mxu0
    %v158 = vadd.f32 %v40, %v157
    %v159 = vpop.f32.mrf.mxu0
    %160 = vmatprep.mubr.f32.mxu0 0.0
    %161 = vmatmul.mubr.f32.gmra.mxu0 %v47
    %v162 = vpop.f32.mrf.mxu0
    %v163 = vadd.f32 %v40, %v162
    %v164 = vpop.f32.mrf.mxu0
    %165 = vmatprep.mubr.f32.mxu0 0.0
    %166 = vmatmul.mubr.f32.gmra.mxu0 %v50
    %v167 = vpop.f32.mrf.mxu0
    %v168 = vadd.f32 %v40, %v167
    %v169 = vpop.f32.mrf.mxu0
    %170 = vmatprep.mubr.f32.mxu0 0.0
    %171 = vmatmul.mubr.f32.gmra.mxu0 %v53
    %v172 = vpop.f32.mrf.mxu0
    %v173 = vadd.f32 %v40, %v172
    %v174 = vpop.f32.mrf.mxu0
    %175 = vmatprep.mubr.f32.mxu0 0.0
    %176 = vmatmul.mubr.f32.gmra.mxu0 %v56
    %v177 = vpop.f32.mrf.mxu0
    %v178 = vadd.f32 %v40, %v177
    %v179 = vpop.f32.mrf.mxu0
    %180 = vmatprep.mubr.f32.mxu0 0.0
    %181 = vmatmul.mubr.f32.gmra.mxu0 %v59
    %v182 = vpop.f32.mrf.mxu0
    %v183 = vadd.f32 %v40, %v182
    %v184 = vpop.f32.mrf.mxu0
    %185 = vmatprep.mubr.f32.mxu0 0.0
    %186 = vmatmul.mubr.f32.gmra.mxu0 %v62
    %v187 = vpop.f32.mrf.mxu0
    %v188 = vadd.f32 %v40, %v187
    %v189 = vpop.f32.mrf.mxu0
    %190 = vmatprep.mubr.f32.mxu0 0.0
    %191 = vmatmul.mubr.f32.gmra.mxu0 %v65
    %v192 = vpop.f32.mrf.mxu0
    %v193 = vadd.f32 %v40, %v192
    %v194 = vpop.f32.mrf.mxu0
    %195 = vmatprep.mubr.f32.mxu0 0.0
    %196 = vmatmul.mubr.f32.gmra.mxu0 %v68
    %v197 = vpop.f32.mrf.mxu0
    %v198 = vadd.f32 %v40, %v197
    %v199 = vpop.f32.mrf.mxu0
    %200 = vmatprep.mubr.f32.mxu0 0.0
    %201 = vmatmul.mubr.f32.gmra.mxu0 %v71
    %v202 = vpop.f32.mrf.mxu0
    %v203 = vadd.f32 %v40, %v202
    %v204 = vpop.f32.mrf.mxu0
    %205 = vmatprep.mubr.f32.mxu0 0.0
    %206 = vmatmul.mubr.f32.gmra.mxu0 %v74
    %v207 = vpop.f32.mrf.mxu0
    %v208 = vadd.f32 %v40, %v207
    %v209 = vpop.f32.mrf.mxu0
    %210 = vmatprep.mubr.f32.mxu0 0.0
    %211 = vmatmul.mubr.f32.gmra.mxu0 %v77
    %v212 = vpop.f32.mrf.mxu0
    %v213 = vadd.f32 %v40, %v212
    %v214 = vpop.f32.mrf.mxu0
    %215 = vmatprep.mubr.f32.mxu0 0.0
    %216 = vmatmul.mubr.f32.gmra.mxu0 %v80
    %v217 = vpop.f32.mrf.mxu0
    %v218 = vadd.f32 %v40, %v217
    %v219 = vpop.f32.mrf.mxu0
    %220 = vmatprep.mubr.f32.mxu0 0.0
    %221 = vmatmul.mubr.f32.gmra.mxu0 %v83
    %v222 = vpop.f32.mrf.mxu0
    %v223 = vadd.f32 %v40, %v222
    %v224 = vpop.f32.mrf.mxu0
    %225 = vmatprep.mubr.f32.mxu0 0.0
    %226 = vmatmul.mubr.f32.gmra.mxu0 %v86
    %v227 = vpop.f32.mrf.mxu0
    %v228 = vadd.f32 %v40, %v227
    %v229 = vpop.f32.mrf.mxu0
    %230 = vmatprep.mubr.f32.mxu0 0.0
    %231 = vmatmul.mubr.f32.gmra.mxu0 %v89
    %v232 = vpop.f32.mrf.mxu0
    %v233 = vadd.f32 %v40, %v232
    %v234 = vpop.f32.mrf.mxu0
    %235 = vdwg.mxu0
    %236 = vxpose.xlu0.b32.start [1/16] %v158, 128
    %237 = vxpose.xlu0.b32.cont [2/16] %v163, 128
    %238 = vxpose.xlu0.b32.cont [3/16] %v168, 128
    %239 = vxpose.xlu0.b32.cont [4/16] %v173, 128
    %240 = vxpose.xlu0.b32.cont [5/16] %v178, 128
    %241 = vxpose.xlu0.b32.cont [6/16] %v183, 128
    %242 = vxpose.xlu0.b32.cont [7/16] %v188, 128
    %243 = vxpose.xlu0.b32.cont [8/16] %v193, 128
    %244 = vxpose.xlu0.b32.cont [9/16] %v198, 128
    %245 = vxpose.xlu0.b32.cont [10/16] %v203, 128
    %246 = vxpose.xlu0.b32.cont [11/16] %v208, 128
    %247 = vxpose.xlu0.b32.cont [12/16] %v213, 128
    %248 = vxpose.xlu0.b32.cont [13/16] %v218, 128
    %249 = vxpose.xlu0.b32.cont [14/16] %v223, 128
    %250 = vxpose.xlu0.b32.cont [15/16] %v228, 128
    %251 = vxpose.xlu0.b32.end [16/16] %v233, 128
    %v252 = vpop.trf.xlu0
    %v253 = vpop.trf.xlu0
    %v254 = vpop.trf.xlu0
    %v255 = vpop.trf.xlu0
    %v256 = vpop.trf.xlu0
    %v257 = vpop.trf.xlu0
    %v258 = vpop.trf.xlu0
    %v259 = vpop.trf.xlu0
    %v260 = vpop.trf.xlu0
    %v261 = vpop.trf.xlu0
    %v262 = vpop.trf.xlu0
    %v263 = vpop.trf.xlu0
    %v264 = vpop.trf.xlu0
    %v265 = vpop.trf.xlu0
    %v266 = vpop.trf.xlu0
    %v267 = vpop.trf.xlu0
    %v268 = vmul.f32 %v252, %v252
    %v270 = vrot.slane %v268, 1
    %v272 = vadd.f32 %v268, %v270
    %v273 = vrot.slane %v268, 2
    %v275 = vadd.f32 %v272, %v273
    %v276 = vadd.f32 %v275, 1.0
    %v277 = vrsqrt.pop %v276
    %v278 = vmul.f32 %v252, %v277
    %v280 = vrot.slane %v277, 7
    %v282 = vmul.f32 %v252, %v280
    %v283 = vrot.slane %v277, 6
    %v285 = vmul.f32 %v252, %v283
    %v286 = vmul.f32 %v278, %v278
    %v287 = vmul.f32 %v282, %v282
    %v288 = vmul.f32 %v285, %v285
    %v290 = vrot.slane %v282, 1
    %v292 = vmul.f32 %v278, %v290
    %v294 = vrot.slane %v285, 2
    %v296 = vmul.f32 %v277, %v294
    %v297 = vmul.f32 %v278, %v294
    %v298 = vmul.f32 %v277, %v290
    %v299 = vrot.slane %v285, 1
    %v301 = vmul.f32 %v282, %v299
    %v302 = vmul.f32 %v277, %v278
    %v304 = vrot.slane %v288, 1
    %v306 = vadd.f32 %v287, %v304
    %v307 = vmul.f32 %v306, 2.0
    %v308 = vsub.f32 1.0, %v307
    %309 = vst [vmem:[#allocation2 - $0x1] sm:$0x2] %v308
    %v310 = vsub.f32 %v292, %v296
    %v311 = vmul.f32 %v310, 2.0
    %312 = vst [vmem:[#allocation2 + $0x1] sm:$0x1] %v311
    %v313 = vadd.f32 %v297, %v298
    %v314 = vmul.f32 %v313, 2.0
    %315 = vst [vmem:[#allocation2 + $0x2] sm:$0x1] %v314
    %v316 = vadd.f32 %v292, %v296
    %v317 = vmul.f32 %v316, 2.0
    %318 = vst [vmem:[#allocation2 + $0x3] sm:$0x1] %v317
    %v319 = vrot.slane %v288, 2
    %v321 = vadd.f32 %v286, %v319
    %v322 = vmul.f32 %v321, 2.0
    %v323 = vsub.f32 1.0, %v322
    %324 = vst [vmem:[#allocation2 + $0x4] sm:$0x1] %v323
    %v326 = vrot.slane %v302, 7
    %v328 = vsub.f32 %v301, %v326
    %v329 = vmul.f32 %v328, 2.0
    %330 = vst [vmem:[#allocation2 + $0x4] sm:$0x2] %v329
    %v331 = vsub.f32 %v297, %v298
    %v332 = vmul.f32 %v331, 2.0
    %333 = vst [vmem:[#allocation2 + $0x6] sm:$0x1] %v332
    %v334 = vadd.f32 %v301, %v326
    %v335 = vmul.f32 %v334, 2.0
    %336 = vst [vmem:[#allocation2 + $0x6] sm:$0x2] %v335
    %v338 = vrot.slane %v287, 1
    %v340 = vadd.f32 %v286, %v338
    %v341 = vmul.f32 %v340, 2.0
    %v342 = vsub.f32 1.0, %v341
    %343 = vst [vmem:[#allocation2 + $0x8] sm:$0x1] %v342
    %344 = vst [vmem:[#allocation2 + $0x6] sm:$0x38] %v252
    // Predicated region
    $region14: #{tpu_custom_call.1} parent=1 // pred_check
      _
    $region15: #{tpu_custom_call.1} parent=1 // pred_check_branch
      %346 = sbr.rel (0) target = $region17
    $region16: #{tpu_custom_call.1} parent=1 // pred_region
      %s348 = ssub.s32 256, 256
      %349 = vsyncadd [#allocation3], %s348
      %s350 = sshll.u32 [#allocation2], 4
      %s351 = int_to_ptr.vmem [resolvable:$true] %s350
      %356 = dma.vmem_to_hbm [thread:$0]  %s351, 256, %s3, [#allocation3], 128, 128, 8
    $region17: #{tpu_custom_call.1} parent=1 // pred_fallthru
      _
    // Predicated region
    $region18: #{tpu_custom_call.1} parent=1 // pred_check
      _
    $region19: #{tpu_custom_call.1} parent=1 // pred_check_branch
      %358 = sbr.rel (0) target = $region21
    $region20: #{tpu_custom_call.1} parent=1 // pred_region
      %359 = dma.done [#allocation3], 256
    $region21: #{tpu_custom_call.1} parent=1 // pred_fallthru
      _
    %360 = vsyncpa [#allocation3], 1

</llo_original>
